<compile_context>
chip_gen: v6e
topology: v6e:2x2x1
jax: 0.10.0
libtpu: 0.0.40
codegen_flags: <defaults>
</compile_context>

<pallas_src>
import jax
import jax.numpy as jnp
from jax import lax
from jax.experimental import pallas as pl
from jax.experimental.pallas import tpu as pltpu


_ROW_BLOCK = 128  # output pixels per grid step (multiple of 8)


def _rotate_gather_kernel(src_ref, valid_ref, x_ref, o_ref):
    """Nearest-neighbour rotation as a row gather.

    src_ref   : SMEM int32 (HW_pad,)   flattened source pixel per output pixel
    valid_ref : SMEM int32 (HW_pad,)   1 if the source is in-bounds, else 0
    x_ref     : VMEM (HW_pad, P)       source planes (pixels on sublanes)
    o_ref     : VMEM (TB, P)           output pixel block
    """
    tb = o_ref.shape[0]
    base = pl.program_id(0) * tb

    def body(p, carry):
        s = src_ref[base + p]
        v = valid_ref[base + p]
        row = x_ref[pl.ds(s, 1), :]
        o_ref[pl.ds(p, 1), :] = jnp.where(v != 0, row, jnp.zeros_like(row))
        return carry

    lax.fori_loop(0, tb, body, 0)


def _rotate_planes(planes, src, valid):
    """Rotate flattened planes.  planes: (P, H*W) -> (P, H*W), one pallas_call."""
    num_planes, hw = planes.shape
    tb = _ROW_BLOCK
    hw_pad = ((hw + tb - 1) // tb) * tb
    pad = hw_pad - hw

    x = planes.T  # (HW, P): output/source pixels on sublanes, planes on lanes
    if pad:
        x = jnp.pad(x, ((0, pad), (0, 0)))
        src = jnp.pad(src, (0, pad))
        valid = jnp.pad(valid, (0, pad))

    out = pl.pallas_call(
        _rotate_gather_kernel,
        out_shape=jax.ShapeDtypeStruct((hw_pad, num_planes), planes.dtype),
        grid_spec=pltpu.PrefetchScalarGridSpec(
            num_scalar_prefetch=2,
            grid=(hw_pad // tb,),
            in_specs=[
                # Whole source image stays resident in VMEM (sources scatter
                # anywhere); constant block index -> fetched once.
                pl.BlockSpec((hw_pad, num_planes), lambda b, src_r, val_r: (0, 0)),
            ],
            out_specs=pl.BlockSpec((tb, num_planes), lambda b, src_r, val_r: (b, 0)),
        ),
        compiler_params=pltpu.CompilerParams(
            dimension_semantics=("parallel",),
        ),
    )(src, valid, x)

    return out[:hw, :].T


def _source_map(h, w, angle):
    """Nearest source index + validity per output pixel, matching torchvision
    F.rotate (degrees, counter-clockwise, expand=False, align_corners=False,
    nearest interpolation, zero fill)."""
    theta = jnp.deg2rad(jnp.asarray(angle, jnp.float32))
    cos_t = jnp.cos(theta)
    sin_t = jnp.sin(theta)
    cy = (h - 1) / 2.0
    cx = (w - 1) / 2.0
    yb = jnp.arange(h, dtype=jnp.float32) - cy  # centred output row coords
    xb = jnp.arange(w, dtype=jnp.float32) - cx  # centred output col coords
    x_src = cos_t * xb[None, :] - sin_t * yb[:, None] + cx
    y_src = sin_t * xb[None, :] + cos_t * yb[:, None] + cy
    xi = jnp.round(x_src).astype(jnp.int32)
    yi = jnp.round(y_src).astype(jnp.int32)
    valid = ((xi >= 0) & (xi < w) & (yi >= 0) & (yi < h)).astype(jnp.int32)
    src = jnp.clip(yi, 0, h - 1) * w + jnp.clip(xi, 0, w - 1)
    return src.reshape(h * w), valid.reshape(h * w)


def rotate(image, mask, angle=None, *, key=None, min_angle=-10, max_angle=10):
    """Pallas equivalent of Rotate.forward(image, mask, angle)."""
    if angle is None:
        if key is None:
            raise ValueError("provide `angle` or a PRNG `key`")
        angle = jax.random.randint(key, (), min_angle, max_angle + 1)

    n, c, h, w = image.shape
    nm, cm, hm, wm = mask.shape
    assert (hm, wm) == (h, w), "image and mask must share spatial dims"

    src, valid = _source_map(h, w, angle)

    img_planes = image.reshape(n * c, h * w)
    msk_planes = mask.reshape(nm * cm, h * w)

    if mask.dtype == image.dtype:
        # Fused path: one pallas_call covers both image and mask planes.
        fused = jnp.concatenate([img_planes, msk_planes], axis=0)
        out = _rotate_planes(fused, src, valid)
        img_out = out[: n * c].reshape(n, c, h, w)
        msk_out = out[n * c :].reshape(nm, cm, hm, wm)
    else:
        img_out = _rotate_planes(img_planes, src, valid).reshape(n, c, h, w)
        msk_out = _rotate_planes(msk_planes, src, valid).reshape(nm, cm, hm, wm)
    return img_out, msk_out


def rotate_reference(x, angle):
    """Pure-JAX reference (same source-map math, plain gather)."""
    n, c, h, w = x.shape
    src, valid = _source_map(h, w, angle)
    flat = x.reshape(n, c, h * w)
    out = jnp.take(flat, src, axis=2)
    out = jnp.where((valid != 0)[None, None, :], out, jnp.zeros_like(out))
    return out.reshape(n, c, h, w)


if __name__ == "__main__":
    key = jax.random.PRNGKey(0)
    k_img, k_msk = jax.random.split(key)
    # NCHW, like the PyTorch module: image (2, 4, 16, 16), mask (2, 1, 16, 16)
    image = jax.random.normal(k_img, (2, 4, 16, 16), dtype=jnp.float32)
    mask = jax.random.uniform(k_msk, (2, 1, 16, 16), dtype=jnp.float32)

    angle = 7
    img_out, msk_out = rotate(image, mask, angle=angle)
    jax.block_until_ready(img_out)
    jax.block_until_ready(msk_out)

    # Exact match vs. the pure-JAX reference (pure data movement -> bit exact).
    assert jnp.array_equal(img_out, rotate_reference(image, angle)), "image mismatch"
    assert jnp.array_equal(msk_out, rotate_reference(mask, angle)), "mask mismatch"

    # angle = 0 must be the identity.
    id_img, id_msk = rotate(image, mask, angle=0)
    assert jnp.array_equal(id_img, image), "identity (angle=0) image mismatch"
    assert jnp.array_equal(id_msk, mask), "identity (angle=0) mask mismatch"

    # angle = 90 on a square image is an exact counter-clockwise rot90.
    r90_img, _ = rotate(image, mask, angle=90)
    assert jnp.array_equal(r90_img, jnp.rot90(image, k=1, axes=(-2, -1))), "rot90 mismatch"

    # Default random-angle path of the module (deterministic given the key).
    _ = rotate(image, mask, angle=None, key=jax.random.PRNGKey(1))

    print("KERNEL_OK")
</pallas_src>

<mosaic_0001>
module attributes {stable_mosaic.version = 11 : i64} {
  func.func @_rotate_gather_kernel(%arg0: i32, %arg1: memref<256xi32, #tpu.memory_space<smem>>, %arg2: memref<256xi32, #tpu.memory_space<smem>>, %arg3: memref<256x10xf32, #tpu.memory_space<vmem>>, %arg4: memref<128x10xf32, #tpu.memory_space<vmem>>) attributes {dimension_semantics = [#tpu.dimension_semantics<parallel>], iteration_bounds = array<i64: 2>, scalar_prefetch = 2 : i64, scratch_operands = 0 : i64, tpu.core_type = #tpu.core_type<tc>, window_params = [{pipeline_mode = #tpu.pipeline_mode<synchronous>, transform_indices = @transform_0, window_bounds = array<i64: 256, 10>}, {transform_indices = @transform_1, window_bounds = array<i64: 128, 10>}]} {
    %c128_i32 = arith.constant 128 : i32
    %0 = arith.muli %arg0, %c128_i32 : i32
    %c0_i32 = arith.constant 0 : i32
    %c128_i32_0 = arith.constant 128 : i32
    %1 = arith.addi %c0_i32, %c128_i32_0 : i32
    %c1_i32 = arith.constant 1 : i32
    scf.for %arg5 = %c0_i32 to %1 step %c1_i32  : i32 {
      %2 = arith.addi %0, %arg5 : i32
      %3 = arith.index_cast %2 : i32 to index
      %4 = memref.load %arg1[%3] : memref<256xi32, #tpu.memory_space<smem>>
      %5 = arith.addi %0, %arg5 : i32
      %6 = arith.index_cast %5 : i32 to index
      %7 = memref.load %arg2[%6] : memref<256xi32, #tpu.memory_space<smem>>
      %8 = arith.index_cast %4 : i32 to index
      %c0 = arith.constant 0 : index
      %9 = vector.load %arg3[%8, %c0] : memref<256x10xf32, #tpu.memory_space<vmem>>, vector<1x10xf32>
      %c0_i32_2 = arith.constant 0 : i32
      %10 = arith.cmpi ne, %7, %c0_i32_2 : i32
      %cst = arith.constant 0.000000e+00 : f32
      %11 = vector.broadcast %cst : f32 to vector<1x10xf32>
      %12 = arith.select %10, %9, %11 : vector<1x10xf32>
      %13 = arith.index_cast %arg5 : i32 to index
      %c0_3 = arith.constant 0 : index
      %14 = vector.load %arg4[%13, %c0_3] : memref<128x10xf32, #tpu.memory_space<vmem>>, vector<1x10xf32>
      tpu.vector_store %arg4[%13, %c0_3], %12 {strides = array<i32>} : memref<128x10xf32, #tpu.memory_space<vmem>>, vector<1x10xf32>,
    }
    %c128_i32_1 = arith.constant 128 : i32
    return
  }
  func.func @transform_0(%arg0: i32, %arg1: memref<256xi32, #tpu.memory_space<smem>>, %arg2: memref<256xi32, #tpu.memory_space<smem>>) -> (i32, i32) {
    %c0_i32 = arith.constant 0 : i32
    %c0_i32_0 = arith.constant 0 : i32
    %c0_i32_1 = arith.constant 0 : i32
    return %c0_i32, %c0_i32_0 : i32, i32
  }
  func.func @transform_1(%arg0: i32, %arg1: memref<256xi32, #tpu.memory_space<smem>>, %arg2: memref<256xi32, #tpu.memory_space<smem>>) -> (i32, i32) {
    %c0_i32 = arith.constant 0 : i32
    %c0_i32_0 = arith.constant 0 : i32
    return %arg0, %c0_i32 : i32, i32
  }
}

</mosaic_0001>

<llo_original>
// kernel: tpu_custom_call.1
$region0: #{tpu_custom_call.1}
  #allocation0 [shape = 'u32[]', space=smem, size = 0x4, offset = 0x4, fixed_abs, tag = 'smem constant byte address 0x4 - core index']
  #allocation1 [shape = 'u32[144,128]{1,0:T(1,128)}', space=vmem, size = 0x12000, scoped, tag = 'internal scratch']
  #allocation2 [shape = 's32[1]{0}', space=sflag, size = 0x4, scoped, tag = 'scoped memory for tpu_custom_call.1']
  #allocation3 [shape = 'u8[1024]{0}', space=smem, size = 0x400, scoped, tag = 'prefetched SMEM operand 0']
  #allocation4 [shape = 'u8[1024]{0}', space=smem, size = 0x400, scoped, tag = 'prefetched SMEM operand 1']
  %s0 = inlined_call_operand.vmem [shape: s32[256], index: 0, kind: input, shape index: {}]
  %s1 = inlined_call_operand.vmem [shape: s32[256], index: 1, kind: input, shape index: {}]
  %s2 = inlined_call_operand.vmem [shape: f32[256,10], index: 2, kind: input, shape index: {}]
  %s3 = inlined_call_operand.vmem [shape: f32[256,10], index: 3, kind: output, shape index: {}]
  %s4 = sld [smem:[#allocation0]]
  $region44: #{tpu_custom_call.1} parent=0
    _
  %s6 = ssub.s32 1, %s4
  %s7 = scalar_select 0, %s6, %s4
  %s8 = sshll.u32 %s0, 4
  %s9 = int_to_ptr.vmem [resolvable:$true] %s8
  %11 = dma.vmem_to_smem %s9, 32, [#allocation3], [#allocation2]
  %s12 = sshll.u32 %s1, 4
  %s13 = int_to_ptr.vmem [resolvable:$true] %s12
  %15 = dma.vmem_to_smem %s13, 32, [#allocation4], [#allocation2]
  %16 = dma.done [#allocation2], 64
  %17 = sfence
  loop: start=0, step=1, limit=4
  $region2: #{tpu_custom_call.1} parent=0 // loop_pre_header
    _
  $region3: #{tpu_custom_call.1} parent=0 // loop_header
    %s19 = sphi 0, %s23
    %p20 = scmp.ge.s32.totalorder %s19, 4
    %s27 = sphi 0, %s27
    %s29 = sphi 0, %s27
    %s30 = sphi 0, %s29
    %s44 = sphi 0, %s30
    %s50 = sphi 0, %s52
    %s53 = sphi 0, %s50
    %s54 = sphi 0, %s53
    %s70 = sphi 0, %s54
  $region4: #{tpu_custom_call.1} parent=0 // loop_header_branch
    %22 = sbr.rel (%p20) target = $region8
  $region5: #{tpu_custom_call.1} parent=0 // loop_body
    %s24 = ssub.s32 %s19, 1
    %s25 = ssub.s32 %s19, 2
    %s26 = sadd.s32 %s19, 1
    %s28 = sadd.s32 %s27, 1
    %p31 = scmp.eq.s32.totalorder %s19, 1
    %p32 = scmp.ne.s32.totalorder %s27, %s29
    %p33 = scmp.eq.s32.totalorder %s19, 0
    %p34 = por %p32, %p33
    %p35 = scmp.ne.s32.totalorder %s27, %s29
    %p36 = scmp.eq.s32.totalorder %s24, 1
    %p37 = por %p35, %p36
    %p38 = scmp.ne.s32.totalorder %s29, %s30
    %p39 = scmp.eq.s32.totalorder %s24, 0
    %p40 = por %p38, %p39
    %p41 = scmp.ne.s32.totalorder %s29, %s30
    %p42 = scmp.eq.s32.totalorder %s25, 1
    %p43 = por %p41, %p42
    %p45 = scmp.ne.s32.totalorder %s30, %s44
    %p46 = scmp.eq.s32.totalorder %s25, 0
    %p47 = por %p45, %p46
    %s48 = ssub.s32 %s19, %s26
    %p49 = scmp.eq.s32.totalorder %s48, 0
    %s51 = sadd.s32 %s50, 1
    %s52 = scalar_select %p49, %s50, %s51
    %p55 = pneg %p49
    %p56 = scmp.eq.s32.totalorder %s19, 1
    %p57 = por %p55, %p56
    %p58 = scmp.ne.s32.totalorder %s50, %s53
    %p59 = scmp.eq.s32.totalorder %s19, 0
    %p60 = por %p58, %p59
    %p61 = scmp.ne.s32.totalorder %s50, %s53
    %p62 = scmp.eq.s32.totalorder %s24, 1
    %p63 = por %p61, %p62
    %p64 = scmp.ne.s32.totalorder %s53, %s54
    %p65 = scmp.eq.s32.totalorder %s24, 0
    %p66 = por %p64, %p65
    %p67 = scmp.ne.s32.totalorder %s53, %s54
    %p68 = scmp.eq.s32.totalorder %s25, 1
    %p69 = por %p67, %p68
    %p71 = scmp.ne.s32.totalorder %s54, %s70
    %p72 = scmp.eq.s32.totalorder %s25, 0
    %p73 = por %p71, %p72
    %p74 = scmp.le.s32.totalorder 1, %s19
    %p75 = scmp.lt.s32.totalorder %s19, 3
    %p76 = pnand %p74, %p75
    %p77 = pneg %p76
    // Predicated region
    $region9: #{tpu_custom_call.1} parent=5 // pred_check
      _
    $region10: #{tpu_custom_call.1} parent=5 // pred_check_branch
      %79 = sbr.rel (%p76) target = $region12
    $region11: #{tpu_custom_call.1} parent=5 // pred_region
      %s80 = ssub.s32 %s19, 1
      // Predicated region
      $region13: #{tpu_custom_call.1} parent=11 // pred_check
        %p81 = pneg %p40
      $region14: #{tpu_custom_call.1} parent=11 // pred_check_branch
        %83 = sbr.rel (%p81) target = $region16
      $region15: #{tpu_custom_call.1} parent=11 // pred_region
        _
      $region16: #{tpu_custom_call.1} parent=11 // pred_fallthru
        _
    $region12: #{tpu_custom_call.1} parent=5 // pred_fallthru
      _
    %p84 = scmp.lt.s32.totalorder %s19, 2
    // Predicated region
    $region17: #{tpu_custom_call.1} parent=5 // pred_check
      %p85 = pneg %p84
    $region18: #{tpu_custom_call.1} parent=5 // pred_check_branch
      %87 = sbr.rel (%p85) target = $region20
    $region19: #{tpu_custom_call.1} parent=5 // pred_region
      _
    $region20: #{tpu_custom_call.1} parent=5 // pred_fallthru
      _
    %p88 = scmp.le.s32.totalorder 1, %s19
    %p89 = scmp.lt.s32.totalorder %s19, 3
    %p90 = pnand %p88, %p89
    %p91 = pneg %p90
    // Predicated region
    $region21: #{tpu_custom_call.1} parent=5 // pred_check
      _
    $region22: #{tpu_custom_call.1} parent=5 // pred_check_branch
      %93 = sbr.rel (%p90) target = $region24
    $region23: #{tpu_custom_call.1} parent=5 // pred_region
      %s94 = ssub.s32 %s19, 1
      %p95 = pneg %p40
      %p96 = pneg %p37
      %p97 = pneg %p66
      %p98 = pneg %p63
      %s99 = smul.u32 16, %s24
      %p100 = scmp.lt.s32.totalorder %s99, 31
      %s101 = scalar_select %p100, %s99, 31
      %s102 = smul.addr %s101, 8
      %s103 = scalar_lea.vmem %s3, %s102
      %s104 = smul.u32 16, %s24
      %p105 = scmp.lt.s32.totalorder %s104, 31
      %s106 = scalar_select %p105, %s104, 31
      %s107 = smul.addr %s106, 8
      %s108 = scalar_lea.vmem %s3, %s107
      %s109 = smul.u32 16, %s24
      %s110 = smul.u32 %s24, 128
      loop: start=0, step=1, limit=128
      $region25: #{tpu_custom_call.1} parent=23 // loop_pre_header
        _
      $region26: #{tpu_custom_call.1} parent=23 // loop_header
        %s112 = sphi 0, %s116
        %p113 = scmp.ge.s32.totalorder %s112, 128
      $region27: #{tpu_custom_call.1} parent=23 // loop_header_branch
        %115 = sbr.rel (%p113) target = $region31
      $region28: #{tpu_custom_call.1} parent=23 // loop_body
        %s117 = sadd.s32 %s110, %s112
        %s118 = sld [smem:[#allocation3 + %s117]]
        %s119 = sld [smem:[#allocation4 + %s117]]
        %s120 = scalar_lea.vmem %s2, %s118
        %v121 = vld [vmem:[%s120] sm:$0x1]
        %p122 = scmp.ne.s32.totalorder %s119, 0
        %s123 = scalar_select %p122, 1, 0
        %v124 = vstv %s123
        %vm125 = vcmp.eq.s32.totalorder %v124, 1
        %v126 = vsel %vm125, %v121, 0.0
        %s127 = scalar_lea.vmem %s108, %s112
        %vm128 = vcmask 73728
        %129 = vst.msk [vmem:[%s127] sm:$0x1] %vm128, %v126
      $region29: #{tpu_custom_call.1} parent=23 // loop_footer
        %s116 = sadd.s32 1, %s112
      $region30: #{tpu_custom_call.1} parent=23 // loop_footer_branch
        %111 = sbr.rel target = $region26
      $region31: #{tpu_custom_call.1} parent=23 // loop_exit
        _
      %s130 = smul.u32 16, %s24
      %p131 = scmp.lt.s32.totalorder %s130, 31
      %s132 = scalar_select %p131, %s130, 31
      %s133 = smul.addr %s132, 8
      %s134 = scalar_lea.vmem %s3, %s133
      // Predicated region
      $region32: #{tpu_custom_call.1} parent=23 // pred_check
        %p135 = pneg %p63
      $region33: #{tpu_custom_call.1} parent=23 // pred_check_branch
        %137 = sbr.rel (%p135) target = $region35
      $region34: #{tpu_custom_call.1} parent=23 // pred_region
        %s138 = smul.u32 16, %s24
      $region35: #{tpu_custom_call.1} parent=23 // pred_fallthru
        _
    $region24: #{tpu_custom_call.1} parent=5 // pred_fallthru
      _
    %p139 = scmp.le.s32.totalorder 2, %s19
    // Predicated region
    $region36: #{tpu_custom_call.1} parent=5 // pred_check
      %p140 = pneg %p139
    $region37: #{tpu_custom_call.1} parent=5 // pred_check_branch
      %142 = sbr.rel (%p140) target = $region39
    $region38: #{tpu_custom_call.1} parent=5 // pred_region
      %s143 = ssub.s32 %s19, 2
      // Predicated region
      $region40: #{tpu_custom_call.1} parent=38 // pred_check
        %p144 = pneg %p69
      $region41: #{tpu_custom_call.1} parent=38 // pred_check_branch
        %146 = sbr.rel (%p144) target = $region43
      $region42: #{tpu_custom_call.1} parent=38 // pred_region
        %s147 = smul.u32 16, %s25
        %p148 = scmp.lt.s32.totalorder %s147, 31
        %s149 = scalar_select %p148, %s147, 31
        %s150 = smul.addr %s149, 8
        %s151 = scalar_lea.vmem %s3, %s150
      $region43: #{tpu_custom_call.1} parent=38 // pred_fallthru
        _
    $region39: #{tpu_custom_call.1} parent=5 // pred_fallthru
      _
  $region6: #{tpu_custom_call.1} parent=0 // loop_footer
    %s23 = sadd.s32 1, %s19
  $region7: #{tpu_custom_call.1} parent=0 // loop_footer_branch
    %18 = sbr.rel target = $region3
  $region8: #{tpu_custom_call.1} parent=0 // loop_exit
    _

</llo_original>
